<compile_context>
chip_gen: v6e
topology: v6e:2x2x1
jax: 0.10.0
libtpu: 0.0.40
codegen_flags: <defaults>
</compile_context>

<pallas_src>
import jax
import jax.numpy as jnp
from jax.experimental import pallas as pl
from jax.experimental.pallas import tpu as pltpu


def _round_up(x, m):
    return ((x + m - 1) // m) * m


# ---------------------------------------------------------------------------
# Kernels: accumulate raw per-row moments into the resident (tb, 1) outputs.
# ---------------------------------------------------------------------------
def _ccc_moments_dense_kernel(y_pred_ref, y_true_ref,
                              st_o, sp_o, stt_o, spp_o, stp_o):
    """seq_lens is None: no mask work (zero padding contributes 0 to sums)."""
    k = pl.program_id(1)

    @pl.when(k == 0)
    def _init():
        st_o[...] = jnp.zeros_like(st_o)
        sp_o[...] = jnp.zeros_like(sp_o)
        stt_o[...] = jnp.zeros_like(stt_o)
        spp_o[...] = jnp.zeros_like(spp_o)
        stp_o[...] = jnp.zeros_like(stp_o)

    yt = y_true_ref[...].astype(jnp.float32)
    yp = y_pred_ref[...].astype(jnp.float32)
    st_o[...] += jnp.sum(yt, axis=1, keepdims=True)
    sp_o[...] += jnp.sum(yp, axis=1, keepdims=True)
    stt_o[...] += jnp.sum(yt * yt, axis=1, keepdims=True)
    spp_o[...] += jnp.sum(yp * yp, axis=1, keepdims=True)
    stp_o[...] += jnp.sum(yt * yp, axis=1, keepdims=True)


def _ccc_moments_masked_kernel(vt_ref, y_pred_ref, y_true_ref, sl_ref,
                               st_o, sp_o, stt_o, spp_o, stp_o):
    """Masked variant; vt_ref = scalar-prefetched per-row-block valid-tile counts."""
    i = pl.program_id(0)
    k = pl.program_id(1)
    tb, tt = y_true_ref.shape

    @pl.when(k == 0)
    def _init():
        st_o[...] = jnp.zeros_like(st_o)
        sp_o[...] = jnp.zeros_like(sp_o)
        stt_o[...] = jnp.zeros_like(stt_o)
        spp_o[...] = jnp.zeros_like(spp_o)
        stp_o[...] = jnp.zeros_like(stp_o)

    @pl.when(k < vt_ref[i])      # skip compute on fully padded sequence tiles
    def _accumulate():
        yt = y_true_ref[...].astype(jnp.float32)
        yp = y_pred_ref[...].astype(jnp.float32)
        # mask[b, t] = 1.0 iff t < seq_len[b] - k*tt  (per-row offset, not per-elem add)
        rem = sl_ref[...] - k * tt                                  # (tb, 1) int32
        pos = jax.lax.broadcasted_iota(jnp.int32, (tb, tt), 1)      # (tb, tt)
        m = (pos < rem).astype(jnp.float32)
        ytm = yt * m
        ypm = yp * m
        st_o[...] += jnp.sum(ytm, axis=1, keepdims=True)
        sp_o[...] += jnp.sum(ypm, axis=1, keepdims=True)
        stt_o[...] += jnp.sum(ytm * yt, axis=1, keepdims=True)
        spp_o[...] += jnp.sum(ypm * yp, axis=1, keepdims=True)
        stp_o[...] += jnp.sum(ytm * yp, axis=1, keepdims=True)


# ---------------------------------------------------------------------------
# Wrapper
# ---------------------------------------------------------------------------
def ccc_loss(y_pred, y_true, seq_lens=None, *, max_tb=256, max_tt=None,
             block_bytes=2 << 20):
    """Pallas implementation of CCCLoss.forward.

    y_pred, y_true: (B, T) arrays (f32 or bf16).
    seq_lens: optional (B,) int array of valid lengths; None => full length.
    Returns a scalar float32 loss = 1 - mean_b(CCC_b).
    """
    y_pred = jnp.asarray(y_pred)
    y_true = jnp.asarray(y_true)
    B, T = y_true.shape
    sl = None if seq_lens is None else jnp.asarray(seq_lens, jnp.int32).reshape(B)

    # ---- fold T into the row axis for tiny batches (sublane occupancy + v7x) --
    r = 1
    if B < 16:
        while (B * r) < 16 and (2 * r) * 128 <= T:
            r *= 2
    rows = B * r

    # ---- row tiling: keep >= 2 row blocks once rows >= 16 (v7x dual TC) ------
    if rows >= 16:
        tb = min(max_tb, _round_up(pl.cdiv(rows, 2), 8))
    else:
        tb = min(rows, max_tb)
    rows_pad = _round_up(rows, tb)
    nb = rows_pad // tb

    # ---- sequence tiling: ~block_bytes per input block, lane aligned ---------
    itemsize = max(y_pred.dtype.itemsize, y_true.dtype.itemsize)
    tf0 = _round_up(pl.cdiv(T, r), 128)                 # folded row length
    tt = min(tf0, max(128, (block_bytes // (tb * itemsize)) // 128 * 128))
    if max_tt is not None:
        tt = min(tt, max(128, (max_tt // 128) * 128))
    tf = _round_up(tf0, tt)
    num_k = tf // tt
    t_total = r * tf

    # ---- pad (zeros) + fold the data -----------------------------------------
    if t_total != T:
        y_pred = jnp.pad(y_pred, ((0, 0), (0, t_total - T)))
        y_true = jnp.pad(y_true, ((0, 0), (0, t_total - T)))
    y_pred = y_pred.reshape(rows, tf)
    y_true = y_true.reshape(rows, tf)
    if rows_pad != rows:
        y_pred = jnp.pad(y_pred, ((0, rows_pad - rows), (0, 0)))
        y_true = jnp.pad(y_true, ((0, rows_pad - rows), (0, 0)))

    out_shape = tuple(jax.ShapeDtypeStruct((rows_pad, 1), jnp.float32)
                      for _ in range(5))
    elems = rows_pad * tf
    bytes_accessed = elems * (y_pred.dtype.itemsize + y_true.dtype.itemsize) \
        + rows_pad * 24

    if sl is None:
        moments = pl.pallas_call(
            _ccc_moments_dense_kernel,
            out_shape=out_shape,
            grid_spec=pltpu.PrefetchScalarGridSpec(
                num_scalar_prefetch=0,
                grid=(nb, num_k),
                in_specs=[
                    pl.BlockSpec((tb, tt), lambda i, k: (i, k)),
                    pl.BlockSpec((tb, tt), lambda i, k: (i, k)),
                ],
                out_specs=[pl.BlockSpec((tb, 1), lambda i, k: (i, 0))
                           for _ in range(5)],
            ),
            compiler_params=pltpu.CompilerParams(
                dimension_semantics=("parallel", "arbitrary")),
            cost_estimate=pl.CostEstimate(flops=8 * elems, transcendentals=0,
                                          bytes_accessed=bytes_accessed),
        )(y_pred, y_true)
    else:
        # Per folded-row valid lengths; padded rows get 0 (fully masked).
        offs = (jnp.arange(r, dtype=jnp.int32) * tf)[None, :]
        sl_fold = jnp.clip(sl[:, None] - offs, 0, tf).reshape(rows)
        if rows_pad != rows:
            sl_fold = jnp.pad(sl_fold, (0, rows_pad - rows))
        sl2 = sl_fold.reshape(rows_pad, 1)
        # Per-row-block valid sequence-tile counts (>= 1 so the clamped block
        # index stays non-negative).  Tiles >= vt[i] repeat the previous block
        # index (DMA skipped by Pallas) and are compute-skipped via pl.when.
        blk_max = jnp.max(sl_fold.reshape(nb, tb), axis=1)
        vt = jnp.clip((blk_max + tt - 1) // tt, 1, num_k).astype(jnp.int32)

        def data_map(i, k, vt_ref):
            return (i, jnp.minimum(k, vt_ref[i] - 1))

        moments = pl.pallas_call(
            _ccc_moments_masked_kernel,
            out_shape=out_shape,
            grid_spec=pltpu.PrefetchScalarGridSpec(
                num_scalar_prefetch=1,
                grid=(nb, num_k),
                in_specs=[
                    pl.BlockSpec((tb, tt), data_map),
                    pl.BlockSpec((tb, tt), data_map),
                    pl.BlockSpec((tb, 1), lambda i, k, vt_ref: (i, 0)),
                ],
                out_specs=[pl.BlockSpec((tb, 1), lambda i, k, vt_ref: (i, 0))
                           for _ in range(5)],
            ),
            compiler_params=pltpu.CompilerParams(
                dimension_semantics=("parallel", "arbitrary")),
            cost_estimate=pl.CostEstimate(flops=12 * elems, transcendentals=0,
                                          bytes_accessed=bytes_accessed),
        )(vt, y_pred, y_true, sl2)

    # ---- tiny O(B) finalize in JAX: combine fold segments, means/vars/CCC ----
    st, sp, stt, spp, stp = (m[:rows, 0].reshape(B, r).sum(axis=1)
                             for m in moments)
    if sl is None:
        n = jnp.full((B,), float(T), dtype=jnp.float32)
    else:
        n = jnp.minimum(sl, T).astype(jnp.float32)
    inv_n = 1.0 / n
    tm = st * inv_n
    pm = sp * inv_n
    tv = stt * inv_n - tm * tm
    pv = spp * inv_n - pm * pm
    cov = stp * inv_n - tm * pm
    # Matches the reference's divide-by-zero semantics (constant rows -> nan).
    ccc = 2.0 * cov / (tv + pv + (tm - pm) ** 2)
    return 1.0 - jnp.mean(ccc)


# ---------------------------------------------------------------------------
# Pure-JAX reference mirroring the PyTorch semantics
# ---------------------------------------------------------------------------
def _ccc_loss_ref(y_pred, y_true, seq_lens=None):
    y_pred = jnp.asarray(y_pred, jnp.float32)
    y_true = jnp.asarray(y_true, jnp.float32)
    B, T = y_true.shape
    if seq_lens is None:
        mask = jnp.ones_like(y_true)
    else:
        col = jnp.arange(T)[None, :]
        mask = (col < jnp.asarray(seq_lens).reshape(B, 1)).astype(y_true.dtype)
    msum = jnp.sum(mask, axis=1, keepdims=True)
    tm = jnp.sum(y_true * mask, axis=1, keepdims=True) / msum
    pm = jnp.sum(y_pred * mask, axis=1, keepdims=True) / msum
    tv = jnp.sum(mask * (y_true - tm) ** 2, axis=1, keepdims=True) / msum
    pv = jnp.sum(mask * (y_pred - pm) ** 2, axis=1, keepdims=True) / msum
    cov = jnp.sum(mask * (y_true - tm) * (y_pred - pm), axis=1, keepdims=True) / msum
    ccc = jnp.mean(2.0 * cov / (tv + pv + (tm - pm) ** 2), axis=0).squeeze(0)
    return 1.0 - ccc


if __name__ == "__main__":
    key = jax.random.PRNGKey(0)
    ks = jax.random.split(key, 6)

    # Case 1: tiny spec shape (B=2, T=8), masked + unmasked.
    B, T = 2, 8
    yp = jax.random.normal(ks[0], (B, T), dtype=jnp.float32)
    yt = jax.random.normal(ks[1], (B, T), dtype=jnp.float32)
    sl = jnp.array([8, 5], dtype=jnp.int32)
    l_masked = ccc_loss(yp, yt, sl)
    l_dense = ccc_loss(yp, yt, None)
    jax.block_until_ready((l_masked, l_dense))
    assert jnp.allclose(l_masked, _ccc_loss_ref(yp, yt, sl),
                        atol=2e-5, rtol=2e-5), l_masked
    assert jnp.allclose(l_dense, _ccc_loss_ref(yp, yt, None),
                        atol=2e-5, rtol=2e-5), l_dense

    # Case 2: ragged tiny batch -> exercises the T-fold (r=2) + multi-tile grid.
    B2, T2 = 4, 300
    yp2 = jax.random.normal(ks[2], (B2, T2), dtype=jnp.float32)
    yt2 = jax.random.normal(ks[3], (B2, T2), dtype=jnp.float32)
    sl2 = jnp.array([300, 250, 17, 129], dtype=jnp.int32)
    l2m = ccc_loss(yp2, yt2, sl2, max_tt=128)
    l2d = ccc_loss(yp2, yt2, None, max_tt=128)
    jax.block_until_ready((l2m, l2d))
    assert jnp.allclose(l2m, _ccc_loss_ref(yp2, yt2, sl2),
                        atol=2e-5, rtol=2e-5), l2m
    assert jnp.allclose(l2d, _ccc_loss_ref(yp2, yt2, None),
                        atol=2e-5, rtol=2e-5), l2d

    # Case 3: B=16 ragged -> 2 parallel row blocks + DMA/compute skip of fully
    # padded sequence tiles in the first row block.
    B3, T3 = 16, 600
    yp3 = jax.random.normal(ks[4], (B3, T3), dtype=jnp.float32)
    yt3 = jax.random.normal(ks[5], (B3, T3), dtype=jnp.float32)
    sl3 = jnp.array([37, 81, 5, 130, 64, 100, 29, 12,
                     600, 555, 300, 411, 68, 523, 222, 599], dtype=jnp.int32)
    l3 = ccc_loss(yp3, yt3, sl3, max_tt=128)
    jax.block_until_ready(l3)
    assert jnp.allclose(l3, _ccc_loss_ref(yp3, yt3, sl3),
                        atol=2e-5, rtol=2e-5), l3

    print("KERNEL_OK")
</pallas_src>

<mosaic_0001>
module attributes {stable_mosaic.version = 11 : i64} {
  func.func @_ccc_moments_masked_kernel(%arg0: i32, %arg1: i32, %arg2: memref<1xi32, #tpu.memory_space<smem>>, %arg3: memref<2x128xf32, #tpu.memory_space<vmem>>, %arg4: memref<2x128xf32, #tpu.memory_space<vmem>>, %arg5: memref<2x1xi32, #tpu.memory_space<vmem>>, %arg6: memref<2x1xf32, #tpu.memory_space<vmem>>, %arg7: memref<2x1xf32, #tpu.memory_space<vmem>>, %arg8: memref<2x1xf32, #tpu.memory_space<vmem>>, %arg9: memref<2x1xf32, #tpu.memory_space<vmem>>, %arg10: memref<2x1xf32, #tpu.memory_space<vmem>>) attributes {dimension_semantics = [#tpu.dimension_semantics<parallel>, #tpu.dimension_semantics<arbitrary>], iteration_bounds = array<i64: 1, 1>, scalar_prefetch = 1 : i64, scratch_operands = 0 : i64, tpu.core_type = #tpu.core_type<tc>, window_params = [{transform_indices = @transform_0, window_bounds = array<i64: 2, 128>}, {transform_indices = @transform_1, window_bounds = array<i64: 2, 128>}, {transform_indices = @transform_2, window_bounds = array<i64: 2, 1>}, {transform_indices = @transform_3, window_bounds = array<i64: 2, 1>}, {transform_indices = @transform_4, window_bounds = array<i64: 2, 1>}, {transform_indices = @transform_5, window_bounds = array<i64: 2, 1>}, {transform_indices = @transform_6, window_bounds = array<i64: 2, 1>}, {transform_indices = @transform_7, window_bounds = array<i64: 2, 1>}]} {
    %c0_i32 = arith.constant 0 : i32
    %0 = arith.cmpi eq, %arg1, %c0_i32 : i32
    %1 = arith.extui %0 : i1 to i32
    %c0_i32_0 = arith.constant 0 : i32
    %2 = arith.cmpi ne, %1, %c0_i32_0 : i32
    scf.if %2 {
      %cst = arith.constant 0.000000e+00 : f32
      %8 = vector.broadcast %cst : f32 to vector<2x1xf32>
      %c0 = arith.constant 0 : index
      %c0_2 = arith.constant 0 : index
      %9 = vector.load %arg6[%c0, %c0_2] : memref<2x1xf32, #tpu.memory_space<vmem>>, vector<2x1xf32>
      tpu.vector_store %arg6[%c0, %c0_2], %8 {strides = array<i32>} : memref<2x1xf32, #tpu.memory_space<vmem>>, vector<2x1xf32>,
      %cst_3 = arith.constant 0.000000e+00 : f32
      %10 = vector.broadcast %cst_3 : f32 to vector<2x1xf32>
      %c0_4 = arith.constant 0 : index
      %c0_5 = arith.constant 0 : index
      %11 = vector.load %arg7[%c0_4, %c0_5] : memref<2x1xf32, #tpu.memory_space<vmem>>, vector<2x1xf32>
      tpu.vector_store %arg7[%c0_4, %c0_5], %10 {strides = array<i32>} : memref<2x1xf32, #tpu.memory_space<vmem>>, vector<2x1xf32>,
      %cst_6 = arith.constant 0.000000e+00 : f32
      %12 = vector.broadcast %cst_6 : f32 to vector<2x1xf32>
      %c0_7 = arith.constant 0 : index
      %c0_8 = arith.constant 0 : index
      %13 = vector.load %arg8[%c0_7, %c0_8] : memref<2x1xf32, #tpu.memory_space<vmem>>, vector<2x1xf32>
      tpu.vector_store %arg8[%c0_7, %c0_8], %12 {strides = array<i32>} : memref<2x1xf32, #tpu.memory_space<vmem>>, vector<2x1xf32>,
      %cst_9 = arith.constant 0.000000e+00 : f32
      %14 = vector.broadcast %cst_9 : f32 to vector<2x1xf32>
      %c0_10 = arith.constant 0 : index
      %c0_11 = arith.constant 0 : index
      %15 = vector.load %arg9[%c0_10, %c0_11] : memref<2x1xf32, #tpu.memory_space<vmem>>, vector<2x1xf32>
      tpu.vector_store %arg9[%c0_10, %c0_11], %14 {strides = array<i32>} : memref<2x1xf32, #tpu.memory_space<vmem>>, vector<2x1xf32>,
      %cst_12 = arith.constant 0.000000e+00 : f32
      %16 = vector.broadcast %cst_12 : f32 to vector<2x1xf32>
      %c0_13 = arith.constant 0 : index
      %c0_14 = arith.constant 0 : index
      %17 = vector.load %arg10[%c0_13, %c0_14] : memref<2x1xf32, #tpu.memory_space<vmem>>, vector<2x1xf32>
      tpu.vector_store %arg10[%c0_13, %c0_14], %16 {strides = array<i32>} : memref<2x1xf32, #tpu.memory_space<vmem>>, vector<2x1xf32>,
    } else {
    }
    %3 = arith.index_cast %arg0 : i32 to index
    %4 = memref.load %arg2[%3] : memref<1xi32, #tpu.memory_space<smem>>
    %5 = arith.cmpi slt, %arg1, %4 : i32
    %6 = arith.extui %5 : i1 to i32
    %c0_i32_1 = arith.constant 0 : i32
    %7 = arith.cmpi ne, %6, %c0_i32_1 : i32
    scf.if %7 {
      %c0 = arith.constant 0 : index
      %c0_2 = arith.constant 0 : index
      %8 = vector.load %arg4[%c0, %c0_2] : memref<2x128xf32, #tpu.memory_space<vmem>>, vector<2x128xf32>
      %c0_3 = arith.constant 0 : index
      %c0_4 = arith.constant 0 : index
      %9 = vector.load %arg3[%c0_3, %c0_4] : memref<2x128xf32, #tpu.memory_space<vmem>>, vector<2x128xf32>
      %c0_5 = arith.constant 0 : index
      %c0_6 = arith.constant 0 : index
      %10 = vector.load %arg5[%c0_5, %c0_6] : memref<2x1xi32, #tpu.memory_space<vmem>>, vector<2x1xi32>
      %c128_i32 = arith.constant 128 : i32
      %11 = arith.muli %arg1, %c128_i32 : i32
      %12 = vector.broadcast %11 : i32 to vector<2x1xi32>
      %13 = arith.subi %10, %12 : vector<2x1xi32>
      %14 = tpu.iota {dimensions = array<i32: 1>} : vector<2x128xi32>
      %15 = vector.broadcast %13 : vector<2x1xi32> to vector<2x128xi32>
      %16 = arith.cmpi slt, %14, %15 : vector<2x128xi32>
      %17 = arith.extui %16 : vector<2x128xi1> to vector<2x128xi32>
      %18 = arith.sitofp %17 : vector<2x128xi32> to vector<2x128xf32>
      %19 = arith.mulf %8, %18 : vector<2x128xf32>
      %20 = arith.mulf %9, %18 : vector<2x128xf32>
      %c0_7 = arith.constant 0 : index
      %c0_8 = arith.constant 0 : index
      %21 = vector.load %arg6[%c0_7, %c0_8] : memref<2x1xf32, #tpu.memory_space<vmem>>, vector<2x1xf32>
      %cst = arith.constant dense<0.000000e+00> : vector<2xf32>
      %22 = vector.multi_reduction <add>, %19, %cst [1] : vector<2x128xf32> to vector<2xf32>
      %23 = vector.shape_cast %22 : vector<2xf32> to vector<2x1xf32>
      %24 = arith.addf %21, %23 : vector<2x1xf32>
      %c0_9 = arith.constant 0 : index
      %c0_10 = arith.constant 0 : index
      %25 = vector.load %arg6[%c0_9, %c0_10] : memref<2x1xf32, #tpu.memory_space<vmem>>, vector<2x1xf32>
      tpu.vector_store %arg6[%c0_9, %c0_10], %24 {strides = array<i32>} : memref<2x1xf32, #tpu.memory_space<vmem>>, vector<2x1xf32>,
      %c0_11 = arith.constant 0 : index
      %c0_12 = arith.constant 0 : index
      %26 = vector.load %arg7[%c0_11, %c0_12] : memref<2x1xf32, #tpu.memory_space<vmem>>, vector<2x1xf32>
      %cst_13 = arith.constant dense<0.000000e+00> : vector<2xf32>
      %27 = vector.multi_reduction <add>, %20, %cst_13 [1] : vector<2x128xf32> to vector<2xf32>
      %28 = vector.shape_cast %27 : vector<2xf32> to vector<2x1xf32>
      %29 = arith.addf %26, %28 : vector<2x1xf32>
      %c0_14 = arith.constant 0 : index
      %c0_15 = arith.constant 0 : index
      %30 = vector.load %arg7[%c0_14, %c0_15] : memref<2x1xf32, #tpu.memory_space<vmem>>, vector<2x1xf32>
      tpu.vector_store %arg7[%c0_14, %c0_15], %29 {strides = array<i32>} : memref<2x1xf32, #tpu.memory_space<vmem>>, vector<2x1xf32>,
      %c0_16 = arith.constant 0 : index
      %c0_17 = arith.constant 0 : index
      %31 = vector.load %arg8[%c0_16, %c0_17] : memref<2x1xf32, #tpu.memory_space<vmem>>, vector<2x1xf32>
      %32 = arith.mulf %19, %8 : vector<2x128xf32>
      %cst_18 = arith.constant dense<0.000000e+00> : vector<2xf32>
      %33 = vector.multi_reduction <add>, %32, %cst_18 [1] : vector<2x128xf32> to vector<2xf32>
      %34 = vector.shape_cast %33 : vector<2xf32> to vector<2x1xf32>
      %35 = arith.addf %31, %34 : vector<2x1xf32>
      %c0_19 = arith.constant 0 : index
      %c0_20 = arith.constant 0 : index
      %36 = vector.load %arg8[%c0_19, %c0_20] : memref<2x1xf32, #tpu.memory_space<vmem>>, vector<2x1xf32>
      tpu.vector_store %arg8[%c0_19, %c0_20], %35 {strides = array<i32>} : memref<2x1xf32, #tpu.memory_space<vmem>>, vector<2x1xf32>,
      %c0_21 = arith.constant 0 : index
      %c0_22 = arith.constant 0 : index
      %37 = vector.load %arg9[%c0_21, %c0_22] : memref<2x1xf32, #tpu.memory_space<vmem>>, vector<2x1xf32>
      %38 = arith.mulf %20, %9 : vector<2x128xf32>
      %cst_23 = arith.constant dense<0.000000e+00> : vector<2xf32>
      %39 = vector.multi_reduction <add>, %38, %cst_23 [1] : vector<2x128xf32> to vector<2xf32>
      %40 = vector.shape_cast %39 : vector<2xf32> to vector<2x1xf32>
      %41 = arith.addf %37, %40 : vector<2x1xf32>
      %c0_24 = arith.constant 0 : index
      %c0_25 = arith.constant 0 : index
      %42 = vector.load %arg9[%c0_24, %c0_25] : memref<2x1xf32, #tpu.memory_space<vmem>>, vector<2x1xf32>
      tpu.vector_store %arg9[%c0_24, %c0_25], %41 {strides = array<i32>} : memref<2x1xf32, #tpu.memory_space<vmem>>, vector<2x1xf32>,
      %c0_26 = arith.constant 0 : index
      %c0_27 = arith.constant 0 : index
      %43 = vector.load %arg10[%c0_26, %c0_27] : memref<2x1xf32, #tpu.memory_space<vmem>>, vector<2x1xf32>
      %44 = arith.mulf %19, %9 : vector<2x128xf32>
      %cst_28 = arith.constant dense<0.000000e+00> : vector<2xf32>
      %45 = vector.multi_reduction <add>, %44, %cst_28 [1] : vector<2x128xf32> to vector<2xf32>
      %46 = vector.shape_cast %45 : vector<2xf32> to vector<2x1xf32>
      %47 = arith.addf %43, %46 : vector<2x1xf32>
      %c0_29 = arith.constant 0 : index
      %c0_30 = arith.constant 0 : index
      %48 = vector.load %arg10[%c0_29, %c0_30] : memref<2x1xf32, #tpu.memory_space<vmem>>, vector<2x1xf32>
      tpu.vector_store %arg10[%c0_29, %c0_30], %47 {strides = array<i32>} : memref<2x1xf32, #tpu.memory_space<vmem>>, vector<2x1xf32>,
    } else {
    }
    return
  }
  func.func @transform_0(%arg0: i32, %arg1: i32, %arg2: memref<1xi32, #tpu.memory_space<smem>>) -> (i32, i32) {
    %0 = arith.index_cast %arg0 : i32 to index
    %1 = memref.load %arg2[%0] : memref<1xi32, #tpu.memory_space<smem>>
    %c1_i32 = arith.constant 1 : i32
    %2 = arith.subi %1, %c1_i32 : i32
    %3 = arith.minsi %arg1, %2 : i32
    %c0_i32 = arith.constant 0 : i32
    return %arg0, %3 : i32, i32
  }
  func.func @transform_1(%arg0: i32, %arg1: i32, %arg2: memref<1xi32, #tpu.memory_space<smem>>) -> (i32, i32) {
    %0 = arith.index_cast %arg0 : i32 to index
    %1 = memref.load %arg2[%0] : memref<1xi32, #tpu.memory_space<smem>>
    %c1_i32 = arith.constant 1 : i32
    %2 = arith.subi %1, %c1_i32 : i32
    %3 = arith.minsi %arg1, %2 : i32
    %c0_i32 = arith.constant 0 : i32
    return %arg0, %3 : i32, i32
  }
  func.func @transform_2(%arg0: i32, %arg1: i32, %arg2: memref<1xi32, #tpu.memory_space<smem>>) -> (i32, i32) {
    %c0_i32 = arith.constant 0 : i32
    %c0_i32_0 = arith.constant 0 : i32
    return %arg0, %c0_i32 : i32, i32
  }
  func.func @transform_3(%arg0: i32, %arg1: i32, %arg2: memref<1xi32, #tpu.memory_space<smem>>) -> (i32, i32) {
    %c0_i32 = arith.constant 0 : i32
    %c0_i32_0 = arith.constant 0 : i32
    return %arg0, %c0_i32 : i32, i32
  }
  func.func @transform_4(%arg0: i32, %arg1: i32, %arg2: memref<1xi32, #tpu.memory_space<smem>>) -> (i32, i32) {
    %c0_i32 = arith.constant 0 : i32
    %c0_i32_0 = arith.constant 0 : i32
    return %arg0, %c0_i32 : i32, i32
  }
  func.func @transform_5(%arg0: i32, %arg1: i32, %arg2: memref<1xi32, #tpu.memory_space<smem>>) -> (i32, i32) {
    %c0_i32 = arith.constant 0 : i32
    %c0_i32_0 = arith.constant 0 : i32
    return %arg0, %c0_i32 : i32, i32
  }
  func.func @transform_6(%arg0: i32, %arg1: i32, %arg2: memref<1xi32, #tpu.memory_space<smem>>) -> (i32, i32) {
    %c0_i32 = arith.constant 0 : i32
    %c0_i32_0 = arith.constant 0 : i32
    return %arg0, %c0_i32 : i32, i32
  }
  func.func @transform_7(%arg0: i32, %arg1: i32, %arg2: memref<1xi32, #tpu.memory_space<smem>>) -> (i32, i32) {
    %c0_i32 = arith.constant 0 : i32
    %c0_i32_0 = arith.constant 0 : i32
    return %arg0, %c0_i32 : i32, i32
  }
}

</mosaic_0001>

<llo_original>
// kernel: tpu_custom_call.1
$region0: #{tpu_custom_call.1}
  #allocation0 [shape = 'u32[]', space=smem, size = 0x4, offset = 0x4, fixed_abs, tag = 'smem constant byte address 0x4 - core index']
  #allocation1 [shape = 'u32[144,128]{1,0:T(1,128)}', space=vmem, size = 0x12000, scoped, tag = 'internal scratch']
  #allocation2 [shape = 's32[1]{0}', space=sflag, size = 0x4, scoped, tag = 'scoped memory for tpu_custom_call.1']
  #allocation3 [shape = 's32[1]{0:T(128)S(6)}', space=smem, size = 0x200, scoped, tag = 'prefetched SMEM operand 0']
  %s0 = inlined_call_operand.<no memory space> [shape: s32[1], index: 0, kind: input, shape index: {}]
  %s1 = inlined_call_operand.vmem [shape: f32[2,128], index: 1, kind: input, shape index: {}]
  %s2 = inlined_call_operand.vmem [shape: f32[2,128], index: 2, kind: input, shape index: {}]
  %s3 = inlined_call_operand.vmem [shape: s32[2,1], index: 3, kind: input, shape index: {}]
  %s4 = inlined_call_operand.vmem [shape: f32[2,1], index: 4, kind: output, shape index: {0}]
  %s5 = inlined_call_operand.vmem [shape: f32[2,1], index: 5, kind: output, shape index: {1}]
  %s6 = inlined_call_operand.vmem [shape: f32[2,1], index: 6, kind: output, shape index: {2}]
  %s7 = inlined_call_operand.vmem [shape: f32[2,1], index: 7, kind: output, shape index: {3}]
  %s8 = inlined_call_operand.vmem [shape: f32[2,1], index: 8, kind: output, shape index: {4}]
  %9 = xla_tuple %s4, %s5, %s6, %s7, %s8
  %s10 = sld [smem:[#allocation0]]
  $region62: #{tpu_custom_call.1} parent=0
    _
  %s12 = ssub.s32 1, %s10
  %s13 = scalar_select 0, %s12, %s10
  %14 = sst [smem:[#allocation3]] %s0
  // Predicated region
  $region2: #{tpu_custom_call.1} parent=0 // pred_check
    _
  $region3: #{tpu_custom_call.1} parent=0 // pred_check_branch
    %16 = sbr.rel (0) target = $region5
  $region4: #{tpu_custom_call.1} parent=0 // pred_region
    %s17 = sld [smem:[#allocation3]]
    %s18 = ssub.s32 %s17, 1
    %p19 = scmp.lt.s32.totalorder 0, %s18
    %s20 = scalar_select %p19, 0, %s18
    %p21 = scmp.lt.s32.totalorder %s20, 0
    %s22 = scalar_select %p21, %s20, 0
    %s23 = smul.addr %s22, 2
    %s24 = scalar_lea.vmem %s1, %s23
    %s25 = sld [smem:[#allocation3]]
    %s26 = ssub.s32 %s25, 1
    %p27 = scmp.lt.s32.totalorder 0, %s26
    %s28 = scalar_select %p27, 0, %s26
  $region5: #{tpu_custom_call.1} parent=0 // pred_fallthru
    _
  // Predicated region
  $region6: #{tpu_custom_call.1} parent=0 // pred_check
    _
  $region7: #{tpu_custom_call.1} parent=0 // pred_check_branch
    %30 = sbr.rel (0) target = $region9
  $region8: #{tpu_custom_call.1} parent=0 // pred_region
    %s31 = sld [smem:[#allocation3]]
    %s32 = ssub.s32 %s31, 1
    %p33 = scmp.lt.s32.totalorder 0, %s32
    %s34 = scalar_select %p33, 0, %s32
    %p35 = scmp.lt.s32.totalorder %s34, 0
    %s36 = scalar_select %p35, %s34, 0
    %s37 = smul.addr %s36, 2
    %s38 = scalar_lea.vmem %s2, %s37
    %s39 = sld [smem:[#allocation3]]
    %s40 = ssub.s32 %s39, 1
    %p41 = scmp.lt.s32.totalorder 0, %s40
    %s42 = scalar_select %p41, 0, %s40
  $region9: #{tpu_custom_call.1} parent=0 // pred_fallthru
    _
  // Predicated region
  $region10: #{tpu_custom_call.1} parent=0 // pred_check
    _
  $region11: #{tpu_custom_call.1} parent=0 // pred_check_branch
    %44 = sbr.rel (0) target = $region13
  $region12: #{tpu_custom_call.1} parent=0 // pred_region
    _
  $region13: #{tpu_custom_call.1} parent=0 // pred_fallthru
    _
  %s45 = sld [smem:[#allocation3]]
  %s46 = ssub.s32 %s45, 1
  %p47 = scmp.lt.s32.totalorder 0, %s46
  %s48 = scalar_select %p47, 0, %s46
  %p49 = scmp.lt.s32.totalorder %s48, 0
  %s50 = scalar_select %p49, %s48, 0
  %s51 = smul.addr %s50, 2
  %s52 = scalar_lea.vmem %s1, %s51
  %s53 = sld [smem:[#allocation3]]
  %s54 = ssub.s32 %s53, 1
  %p55 = scmp.lt.s32.totalorder 0, %s54
  %s56 = scalar_select %p55, 0, %s54
  %p57 = scmp.lt.s32.totalorder %s56, 0
  %s58 = scalar_select %p57, %s56, 0
  %s59 = smul.addr %s58, 2
  %s60 = scalar_lea.vmem %s2, %s59
  %s61 = sld [smem:[#allocation3]]
  %s62 = ssub.s32 %s61, 1
  %p63 = scmp.lt.s32.totalorder 0, %s62
  %s64 = scalar_select %p63, 0, %s62
  %p65 = scmp.lt.s32.totalorder %s64, 0
  %s66 = scalar_select %p65, %s64, 0
  %s67 = smul.addr %s66, 2
  %s68 = scalar_lea.vmem %s1, %s67
  %s69 = sld [smem:[#allocation3]]
  %s70 = ssub.s32 %s69, 1
  %p71 = scmp.lt.s32.totalorder 0, %s70
  %s72 = scalar_select %p71, 0, %s70
  %s73 = sld [smem:[#allocation3]]
  %s74 = ssub.s32 %s73, 1
  %p75 = scmp.lt.s32.totalorder 0, %s74
  %s76 = scalar_select %p75, 0, %s74
  %p77 = scmp.lt.s32.totalorder %s76, 0
  %s78 = scalar_select %p77, %s76, 0
  %s79 = smul.addr %s78, 2
  %s80 = scalar_lea.vmem %s2, %s79
  %s81 = sld [smem:[#allocation3]]
  %s82 = ssub.s32 %s81, 1
  %p83 = scmp.lt.s32.totalorder 0, %s82
  %s84 = scalar_select %p83, 0, %s82
  %p85 = scmp.eq.s32.totalorder 0, 0
  // Predicated region
  $region14: #{tpu_custom_call.1} parent=0 // pred_check
    %p86 = pneg %p85
  $region15: #{tpu_custom_call.1} parent=0 // pred_check_branch
    %88 = sbr.rel (%p86) target = $region17
  $region16: #{tpu_custom_call.1} parent=0 // pred_region
    %vm89 = vcmask 1024
    %90 = vst.msk [vmem:[%s4] sm:$0x3] %vm89, 0.0
    %91 = vst.msk [vmem:[%s5] sm:$0x3] %vm89, 0.0
    %92 = vst.msk [vmem:[%s6] sm:$0x3] %vm89, 0.0
    %93 = vst.msk [vmem:[%s7] sm:$0x3] %vm89, 0.0
    %94 = vst.msk [vmem:[%s8] sm:$0x3] %vm89, 0.0
  $region17: #{tpu_custom_call.1} parent=0 // pred_fallthru
    _
  %s95 = sld [smem:[#allocation3]]
  %p96 = scmp.lt.s32.totalorder 0, %s95
  // Predicated region
  $region18: #{tpu_custom_call.1} parent=0 // pred_check
    %p97 = pneg %p96
  $region19: #{tpu_custom_call.1} parent=0 // pred_check_branch
    %99 = sbr.rel (%p97) target = $region21
  $region20: #{tpu_custom_call.1} parent=0 // pred_region
    %v100 = vld [vmem:[%s80] sm:$0x3]
    %v101 = vld [vmem:[%s68] sm:$0x3]
    %v102 = vld [vmem:[%s3] sm:$0x3]
    %s103 = smul.u32 0, 128
    %v104 = vstv %s103
    %v105 = vsub.s32 %v102, %v104
    %v106 = vlaneseq
    %v107 = vand.u32 %v106, 127
    %108 = vset.pattern.permute.xlu0 0
    %109 = vperm.xlu0 %108, %v105
    %v110 = vpop.permute.xlu0 %109
    %vm111 = vcmp.lt.s32.totalorder %v107, %v110
    %v112 = vsel %vm111, 1, 0
    %v113 = vcvt.s32.f32 %v112
    %v114 = vmul.f32 %v100, %v113
    %v115 = vmul.f32 %v101, %v113
    %v116 = vld [vmem:[%s4] sm:$0x3]
    %vm117 = vcmask 1041408
    %v118 = vsel %vm117, %v114, 0.0
    %119 = vadd.xlane.f32.xlu0 %v118
    %v120 = vpop.xlane.xlu0 %119
    %v121 = vadd.f32 %v116, %v120
    %vm122 = vcmask 1024
    %123 = vst.msk [vmem:[%s4] sm:$0x3] %vm122, %v121
    %v124 = vld [vmem:[%s5] sm:$0x3]
    %v125 = vsel %vm117, %v115, 0.0
    %126 = vadd.xlane.f32.xlu0 %v125
    %v127 = vpop.xlane.xlu0 %126
    %v128 = vadd.f32 %v124, %v127
    %129 = vst.msk [vmem:[%s5] sm:$0x3] %vm122, %v128
    %v130 = vld [vmem:[%s6] sm:$0x3]
    %v131 = vmul.f32 %v114, %v100
    %v132 = vsel %vm117, %v131, 0.0
    %133 = vadd.xlane.f32.xlu0 %v132
    %v134 = vpop.xlane.xlu0 %133
    %v135 = vadd.f32 %v130, %v134
    %136 = vst.msk [vmem:[%s6] sm:$0x3] %vm122, %v135
    %v137 = vld [vmem:[%s7] sm:$0x3]
    %v138 = vmul.f32 %v115, %v101
    %v139 = vsel %vm117, %v138, 0.0
    %140 = vadd.xlane.f32.xlu0 %v139
    %v141 = vpop.xlane.xlu0 %140
    %v142 = vadd.f32 %v137, %v141
    %143 = vst.msk [vmem:[%s7] sm:$0x3] %vm122, %v142
    %v144 = vld [vmem:[%s8] sm:$0x3]
    %v145 = vmul.f32 %v114, %v101
    %v146 = vsel %vm117, %v145, 0.0
    %147 = vadd.xlane.f32.xlu0 %v146
    %v148 = vpop.xlane.xlu0 %147
    %v149 = vadd.f32 %v144, %v148
    %150 = vst.msk [vmem:[%s8] sm:$0x3] %vm122, %v149
  $region21: #{tpu_custom_call.1} parent=0 // pred_fallthru
    _
  // Predicated region
  $region22: #{tpu_custom_call.1} parent=0 // pred_check
    _
  $region23: #{tpu_custom_call.1} parent=0 // pred_check_branch
    %152 = sbr.rel (0) target = $region25
  $region24: #{tpu_custom_call.1} parent=0 // pred_region
    _
  $region25: #{tpu_custom_call.1} parent=0 // pred_fallthru
    _
  // Predicated region
  $region26: #{tpu_custom_call.1} parent=0 // pred_check
    _
  $region27: #{tpu_custom_call.1} parent=0 // pred_check_branch
    %154 = sbr.rel (0) target = $region29
  $region28: #{tpu_custom_call.1} parent=0 // pred_region
    _
  $region29: #{tpu_custom_call.1} parent=0 // pred_fallthru
    _
  // Predicated region
  $region30: #{tpu_custom_call.1} parent=0 // pred_check
    _
  $region31: #{tpu_custom_call.1} parent=0 // pred_check_branch
    %156 = sbr.rel (0) target = $region33
  $region32: #{tpu_custom_call.1} parent=0 // pred_region
    _
  $region33: #{tpu_custom_call.1} parent=0 // pred_fallthru
    _
  // Predicated region
  $region34: #{tpu_custom_call.1} parent=0 // pred_check
    _
  $region35: #{tpu_custom_call.1} parent=0 // pred_check_branch
    %158 = sbr.rel (0) target = $region37
  $region36: #{tpu_custom_call.1} parent=0 // pred_region
    _
  $region37: #{tpu_custom_call.1} parent=0 // pred_fallthru
    _
  // Predicated region
  $region38: #{tpu_custom_call.1} parent=0 // pred_check
    _
  $region39: #{tpu_custom_call.1} parent=0 // pred_check_branch
    %160 = sbr.rel (0) target = $region41
  $region40: #{tpu_custom_call.1} parent=0 // pred_region
    _
  $region41: #{tpu_custom_call.1} parent=0 // pred_fallthru
    _
  // Predicated region
  $region42: #{tpu_custom_call.1} parent=0 // pred_check
    _
  $region43: #{tpu_custom_call.1} parent=0 // pred_check_branch
    %162 = sbr.rel (0) target = $region45
  $region44: #{tpu_custom_call.1} parent=0 // pred_region
    _
  $region45: #{tpu_custom_call.1} parent=0 // pred_fallthru
    _
  // Predicated region
  $region46: #{tpu_custom_call.1} parent=0 // pred_check
    _
  $region47: #{tpu_custom_call.1} parent=0 // pred_check_branch
    %164 = sbr.rel (0) target = $region49
  $region48: #{tpu_custom_call.1} parent=0 // pred_region
    _
  $region49: #{tpu_custom_call.1} parent=0 // pred_fallthru
    _
  // Predicated region
  $region50: #{tpu_custom_call.1} parent=0 // pred_check
    _
  $region51: #{tpu_custom_call.1} parent=0 // pred_check_branch
    %166 = sbr.rel (0) target = $region53
  $region52: #{tpu_custom_call.1} parent=0 // pred_region
    _
  $region53: #{tpu_custom_call.1} parent=0 // pred_fallthru
    _
  // Predicated region
  $region54: #{tpu_custom_call.1} parent=0 // pred_check
    _
  $region55: #{tpu_custom_call.1} parent=0 // pred_check_branch
    %168 = sbr.rel (0) target = $region57
  $region56: #{tpu_custom_call.1} parent=0 // pred_region
    _
  $region57: #{tpu_custom_call.1} parent=0 // pred_fallthru
    _
  // Predicated region
  $region58: #{tpu_custom_call.1} parent=0 // pred_check
    _
  $region59: #{tpu_custom_call.1} parent=0 // pred_check_branch
    %170 = sbr.rel (0) target = $region61
  $region60: #{tpu_custom_call.1} parent=0 // pred_region
    _
  $region61: #{tpu_custom_call.1} parent=0 // pred_fallthru
    _

</llo_original>
